<compile_context>
chip_gen: v7x
topology: tpu7x:2x2x1
jax: 0.10.0
libtpu: 0.0.40
codegen_flags: <defaults>
</compile_context>

<pallas_src>
import jax
import jax.numpy as jnp
from jax.experimental import pallas as pl
from jax.experimental.pallas import tpu as pltpu


def _xor_kernel(x_ref, w1_ref, b1_ref, w2_ref, b2_ref, o_ref):
    # x_ref : (TB, 2) f32 VMEM
    # w1_ref: (2, 2)  f32 SMEM   (PyTorch layout: w1[n, k])
    # b1_ref: (2,)    f32 SMEM
    # w2_ref: (1, 2)  f32 SMEM
    # b2_ref: (1,)    f32 SMEM
    # o_ref : (TB, 1) f32 VMEM
    x = x_ref[...]
    x0 = x[:, 0:1]  # (TB, 1)
    x1 = x[:, 1:2]  # (TB, 1)

    # Layer 1: h_n = x0 * w1[n, 0] + x1 * w1[n, 1] + b1[n]   (pure VPU FMAs,
    # scalar weights broadcast from SMEM — no transpose, no MXU).
    h0 = x0 * w1_ref[0, 0] + x1 * w1_ref[0, 1] + b1_ref[0]
    h1 = x0 * w1_ref[1, 0] + x1 * w1_ref[1, 1] + b1_ref[1]

    # ReLU
    a0 = jnp.maximum(h0, 0.0)
    a1 = jnp.maximum(h1, 0.0)

    # Layer 2: y = a0 * w2[0, 0] + a1 * w2[0, 1] + b2[0]
    o_ref[...] = a0 * w2_ref[0, 0] + a1 * w2_ref[0, 1] + b2_ref[0]


def xor_forward(x, w1, b1, w2, b2, *, tb=None):
    """Fused forward pass of XOR: relu(x @ w1.T + b1) @ w2.T + b2."""
    B, in_features = x.shape
    assert in_features == 2, "XOR expects 2 input features"
    assert w1.shape == (2, 2) and b1.shape == (2,)
    assert w2.shape == (1, 2) and b2.shape == (1,)

    x = x.astype(jnp.float32)
    w1 = w1.astype(jnp.float32)
    b1 = b1.astype(jnp.float32)
    w2 = w2.astype(jnp.float32)
    b2 = b2.astype(jnp.float32)

    # Batch tile: whole batch in one block when small, otherwise large blocks
    # (bandwidth-bound kernel; big tiles amortize per-grid-step overhead).
    if tb is None:
        tb = B if B <= 2048 else 2048
    grid = (pl.cdiv(B, tb),)

    # Advisory cost estimate: 2 FMAs/row/output for layer 1 (2 outputs) plus
    # 2 FMAs/row for layer 2; bytes = read x, write y, plus tiny params.
    flops = B * (2 * 2 * 2 + 2 * 2 * 1)
    bytes_accessed = B * 2 * 4 + B * 1 * 4 + 4 * (w1.size + b1.size + w2.size + b2.size)

    return pl.pallas_call(
        _xor_kernel,
        out_shape=jax.ShapeDtypeStruct((B, 1), jnp.float32),
        grid=grid,
        in_specs=[
            pl.BlockSpec((tb, 2), lambda i: (i, 0),
                         memory_space=pltpu.MemorySpace.VMEM),
            pl.BlockSpec((2, 2), lambda i: (0, 0),
                         memory_space=pltpu.MemorySpace.SMEM),
            pl.BlockSpec((2,), lambda i: (0,),
                         memory_space=pltpu.MemorySpace.SMEM),
            pl.BlockSpec((1, 2), lambda i: (0, 0),
                         memory_space=pltpu.MemorySpace.SMEM),
            pl.BlockSpec((1,), lambda i: (0,),
                         memory_space=pltpu.MemorySpace.SMEM),
        ],
        out_specs=pl.BlockSpec((tb, 1), lambda i: (i, 0),
                               memory_space=pltpu.MemorySpace.VMEM),
        compiler_params=pltpu.CompilerParams(
            dimension_semantics=("parallel",)),  # lets v7x shard batch over 2 TCs
        cost_estimate=pl.CostEstimate(
            flops=flops, transcendentals=0, bytes_accessed=bytes_accessed),
    )(x, w1, b1, w2, b2)


def init_xor_params(key):
    """PyTorch-style nn.Linear init (uniform in [-1/sqrt(fan_in), 1/sqrt(fan_in)]),
    deterministic from `key`. Nonzero so the test actually exercises the math."""
    k1, k2, k3, k4 = jax.random.split(key, 4)
    bound1 = 1.0 / jnp.sqrt(2.0)
    w1 = jax.random.uniform(k1, (2, 2), jnp.float32, -bound1, bound1)
    b1 = jax.random.uniform(k2, (2,), jnp.float32, -bound1, bound1)
    bound2 = 1.0 / jnp.sqrt(2.0)
    w2 = jax.random.uniform(k3, (1, 2), jnp.float32, -bound2, bound2)
    b2 = jax.random.uniform(k4, (1,), jnp.float32, -bound2, bound2)
    return w1, b1, w2, b2


def _reference(x, w1, b1, w2, b2):
    h = jnp.maximum(x @ w1.T + b1, 0.0)
    return h @ w2.T + b2


if __name__ == "__main__":
    key = jax.random.PRNGKey(0)
    kx, kp, kx2 = jax.random.split(key, 3)

    w1, b1, w2, b2 = init_xor_params(kp)

    # Small-shape check (whole batch in one block).
    B = 8
    x = jax.random.normal(kx, (B, 2), dtype=jnp.float32)
    y = jax.block_until_ready(xor_forward(x, w1, b1, w2, b2))
    y_ref = _reference(x, w1, b1, w2, b2)
    assert y.shape == (B, 1)
    assert jnp.allclose(y, y_ref, atol=1e-5), "mismatch vs reference (B=8)"

    # Tiled check: exercises the batch grid (4 grid steps of 512 rows).
    B2 = 2048
    x2 = jax.random.normal(kx2, (B2, 2), dtype=jnp.float32)
    y2 = jax.block_until_ready(xor_forward(x2, w1, b1, w2, b2, tb=512))
    y2_ref = _reference(x2, w1, b1, w2, b2)
    assert y2.shape == (B2, 1)
    assert jnp.allclose(y2, y2_ref, atol=1e-5), "mismatch vs reference (B=2048)"

    print("KERNEL_OK")
</pallas_src>

<mosaic_0001>
module attributes {stable_mosaic.version = 11 : i64} {
  func.func @_xor_kernel(%arg0: i32, %arg1: memref<8x2xf32, #tpu.memory_space<vmem>>, %arg2: memref<2x2xf32, #tpu.memory_space<smem>>, %arg3: memref<2xf32, #tpu.memory_space<smem>>, %arg4: memref<1x2xf32, #tpu.memory_space<smem>>, %arg5: memref<1xf32, #tpu.memory_space<smem>>, %arg6: memref<8x1xf32, #tpu.memory_space<vmem>>) attributes {dimension_semantics = [#tpu.dimension_semantics<parallel>], iteration_bounds = array<i64: 1>, scalar_prefetch = 0 : i64, scratch_operands = 0 : i64, tpu.core_type = #tpu.core_type<tc>, window_params = [{transform_indices = @transform_0, window_bounds = array<i64: 8, 2>}, {transform_indices = @transform_1, window_bounds = array<i64: 2, 2>}, {transform_indices = @transform_2, window_bounds = array<i64: 2>}, {transform_indices = @transform_3, window_bounds = array<i64: 1, 2>}, {transform_indices = @transform_4, window_bounds = array<i64: 1>}, {transform_indices = @transform_5, window_bounds = array<i64: 8, 1>}]} {
    %c0 = arith.constant 0 : index
    %c0_0 = arith.constant 0 : index
    %0 = vector.load %arg1[%c0, %c0_0] : memref<8x2xf32, #tpu.memory_space<vmem>>, vector<8x2xf32>
    %1 = vector.extract_strided_slice %0 {offsets = [0, 0], sizes = [8, 1], strides = [1, 1]} : vector<8x2xf32> to vector<8x1xf32>
    %2 = vector.extract_strided_slice %0 {offsets = [0, 1], sizes = [8, 1], strides = [1, 1]} : vector<8x2xf32> to vector<8x1xf32>
    %c0_1 = arith.constant 0 : index
    %c0_2 = arith.constant 0 : index
    %3 = memref.load %arg2[%c0_1, %c0_2] : memref<2x2xf32, #tpu.memory_space<smem>>
    %4 = vector.broadcast %3 : f32 to vector<8x1xf32>
    %5 = arith.mulf %1, %4 : vector<8x1xf32>
    %c0_3 = arith.constant 0 : index
    %c1 = arith.constant 1 : index
    %6 = memref.load %arg2[%c0_3, %c1] : memref<2x2xf32, #tpu.memory_space<smem>>
    %7 = vector.broadcast %6 : f32 to vector<8x1xf32>
    %8 = arith.mulf %2, %7 : vector<8x1xf32>
    %9 = arith.addf %5, %8 : vector<8x1xf32>
    %c0_4 = arith.constant 0 : index
    %10 = memref.load %arg3[%c0_4] : memref<2xf32, #tpu.memory_space<smem>>
    %11 = vector.broadcast %10 : f32 to vector<8x1xf32>
    %12 = arith.addf %9, %11 : vector<8x1xf32>
    %c1_5 = arith.constant 1 : index
    %c0_6 = arith.constant 0 : index
    %13 = memref.load %arg2[%c1_5, %c0_6] : memref<2x2xf32, #tpu.memory_space<smem>>
    %14 = vector.broadcast %13 : f32 to vector<8x1xf32>
    %15 = arith.mulf %1, %14 : vector<8x1xf32>
    %c1_7 = arith.constant 1 : index
    %c1_8 = arith.constant 1 : index
    %16 = memref.load %arg2[%c1_7, %c1_8] : memref<2x2xf32, #tpu.memory_space<smem>>
    %17 = vector.broadcast %16 : f32 to vector<8x1xf32>
    %18 = arith.mulf %2, %17 : vector<8x1xf32>
    %19 = arith.addf %15, %18 : vector<8x1xf32>
    %c1_9 = arith.constant 1 : index
    %20 = memref.load %arg3[%c1_9] : memref<2xf32, #tpu.memory_space<smem>>
    %21 = vector.broadcast %20 : f32 to vector<8x1xf32>
    %22 = arith.addf %19, %21 : vector<8x1xf32>
    %cst = arith.constant 0.000000e+00 : f32
    %23 = vector.broadcast %cst : f32 to vector<8x1xf32>
    %24 = arith.maximumf %12, %23 : vector<8x1xf32>
    %cst_10 = arith.constant 0.000000e+00 : f32
    %25 = vector.broadcast %cst_10 : f32 to vector<8x1xf32>
    %26 = arith.maximumf %22, %25 : vector<8x1xf32>
    %c0_11 = arith.constant 0 : index
    %c0_12 = arith.constant 0 : index
    %27 = memref.load %arg4[%c0_11, %c0_12] : memref<1x2xf32, #tpu.memory_space<smem>>
    %28 = vector.broadcast %27 : f32 to vector<8x1xf32>
    %29 = arith.mulf %24, %28 : vector<8x1xf32>
    %c0_13 = arith.constant 0 : index
    %c1_14 = arith.constant 1 : index
    %30 = memref.load %arg4[%c0_13, %c1_14] : memref<1x2xf32, #tpu.memory_space<smem>>
    %31 = vector.broadcast %30 : f32 to vector<8x1xf32>
    %32 = arith.mulf %26, %31 : vector<8x1xf32>
    %33 = arith.addf %29, %32 : vector<8x1xf32>
    %c0_15 = arith.constant 0 : index
    %34 = memref.load %arg5[%c0_15] : memref<1xf32, #tpu.memory_space<smem>>
    %35 = vector.broadcast %34 : f32 to vector<8x1xf32>
    %36 = arith.addf %33, %35 : vector<8x1xf32>
    %c0_16 = arith.constant 0 : index
    %c0_17 = arith.constant 0 : index
    %37 = vector.load %arg6[%c0_16, %c0_17] : memref<8x1xf32, #tpu.memory_space<vmem>>, vector<8x1xf32>
    tpu.vector_store %arg6[%c0_16, %c0_17], %36 {strides = array<i32>} : memref<8x1xf32, #tpu.memory_space<vmem>>, vector<8x1xf32>,
    return
  }
  func.func @transform_0(%arg0: i32) -> (i32, i32) {
    %c0_i32 = arith.constant 0 : i32
    %c0_i32_0 = arith.constant 0 : i32
    return %arg0, %c0_i32 : i32, i32
  }
  func.func @transform_1(%arg0: i32) -> (i32, i32) {
    %c0_i32 = arith.constant 0 : i32
    %c0_i32_0 = arith.constant 0 : i32
    %c0_i32_1 = arith.constant 0 : i32
    return %c0_i32, %c0_i32_0 : i32, i32
  }
  func.func @transform_2(%arg0: i32) -> i32 {
    %c0_i32 = arith.constant 0 : i32
    %c0_i32_0 = arith.constant 0 : i32
    return %c0_i32 : i32
  }
  func.func @transform_3(%arg0: i32) -> (i32, i32) {
    %c0_i32 = arith.constant 0 : i32
    %c0_i32_0 = arith.constant 0 : i32
    %c0_i32_1 = arith.constant 0 : i32
    return %c0_i32, %c0_i32_0 : i32, i32
  }
  func.func @transform_4(%arg0: i32) -> i32 {
    %c0_i32 = arith.constant 0 : i32
    %c0_i32_0 = arith.constant 0 : i32
    return %c0_i32 : i32
  }
  func.func @transform_5(%arg0: i32) -> (i32, i32) {
    %c0_i32 = arith.constant 0 : i32
    %c0_i32_0 = arith.constant 0 : i32
    return %arg0, %c0_i32 : i32, i32
  }
}

</mosaic_0001>

<llo_original>
// kernel: tpu_custom_call.1
$region0: #{tpu_custom_call.1}
  #allocation0 [shape = 'u32[]', space=smem, size = 0x4, offset = 0x4, fixed_abs, tag = 'smem constant byte address 0x4 - core index']
  #allocation1 [shape = 'u32[144,128]{1,0:T(1,128)}', space=vmem, size = 0x12000, scoped, tag = 'internal scratch']
  #allocation2 [shape = 'f32[1]{0:T(128)S(6)}', space=smem, size = 0x200, scoped, tag = 'scoped memory for tpu_custom_call.1']
  %s0 = inlined_call_operand.vmem [shape: f32[8,2], index: 0, kind: input, shape index: {}]
  %s1 = inlined_call_operand.vmem [shape: f32[2,2], index: 1, kind: input, shape index: {}]
  %s2 = inlined_call_operand.vmem [shape: f32[2], index: 2, kind: input, shape index: {}]
  %s3 = inlined_call_operand.vmem [shape: f32[1,2], index: 3, kind: input, shape index: {}]
  %s4 = inlined_call_operand.<no memory space> [shape: f32[1], index: 4, kind: input, shape index: {}]
  %s5 = inlined_call_operand.vmem [shape: f32[8,1], index: 5, kind: output, shape index: {}]
  %s6 = sld [smem:[#allocation0]]
  $region42: #{tpu_custom_call.1} parent=0
    _
  %s8 = ssub.s32 1, %s6
  %s9 = scalar_select 0, %s8, %s6
  %10 = sst [smem:[#allocation2]] %s4
  $region1: #{tpu_custom_call.1} parent=0
    #allocation3 [shape = 'u8[1024]{0}', space=smem, size = 0x400, scoped, tag = 'input window, operand 1, single buffered']
    #allocation4 [shape = 's32[1]{0}', space=sflag, size = 0x4, scoped, tag = 'scoped memory for tpu_custom_call.1']
    #allocation5 [shape = 'u8[512]{0}', space=smem, size = 0x200, scoped, tag = 'input window, operand 2, single buffered']
    #allocation6 [shape = 's32[1]{0}', space=sflag, size = 0x4, scoped, tag = 'scoped memory for tpu_custom_call.1']
    #allocation7 [shape = 'u8[512]{0}', space=smem, size = 0x200, scoped, tag = 'input window, operand 3, single buffered']
    %11 = vsyncpa [#allocation4], 0
    %12 = vsyncpa [#allocation6], 0
    // Predicated region
    $region2: #{tpu_custom_call.1} parent=1 // pred_check
      _
    $region3: #{tpu_custom_call.1} parent=1 // pred_check_branch
      %14 = sbr.rel (0) target = $region5
    $region4: #{tpu_custom_call.1} parent=1 // pred_region
      _
    $region5: #{tpu_custom_call.1} parent=1 // pred_fallthru
      _
    // Predicated region
    $region6: #{tpu_custom_call.1} parent=1 // pred_check
      _
    $region7: #{tpu_custom_call.1} parent=1 // pred_check_branch
      %16 = sbr.rel (0) target = $region9
    $region8: #{tpu_custom_call.1} parent=1 // pred_region
      %s18 = ssub.s32 32, 32
      %19 = vsyncadd [#allocation4], %s18
      %s21 = sshll.u32 %s1, 4
      %s22 = int_to_ptr.vmem [resolvable:$true] %s21
      %24 = dma.vmem_to_smem %s22, 32, [#allocation3], [#allocation4]
    $region9: #{tpu_custom_call.1} parent=1 // pred_fallthru
      _
    // Predicated region
    $region10: #{tpu_custom_call.1} parent=1 // pred_check
      _
    $region11: #{tpu_custom_call.1} parent=1 // pred_check_branch
      %26 = sbr.rel (0) target = $region13
    $region12: #{tpu_custom_call.1} parent=1 // pred_region
      %s28 = ssub.s32 16, 16
      %29 = vsyncadd [#allocation6], %s28
      %s31 = sshll.u32 %s2, 4
      %s32 = int_to_ptr.vmem [resolvable:$true] %s31
      %34 = dma.vmem_to_smem %s32, 16, [#allocation5], [#allocation6]
    $region13: #{tpu_custom_call.1} parent=1 // pred_fallthru
      _
    // Predicated region
    $region14: #{tpu_custom_call.1} parent=1 // pred_check
      _
    $region15: #{tpu_custom_call.1} parent=1 // pred_check_branch
      %36 = sbr.rel (0) target = $region17
    $region16: #{tpu_custom_call.1} parent=1 // pred_region
      %s38 = ssub.s32 16, 16
      %39 = vsyncadd [#allocation6], %s38
      %s41 = sshll.u32 %s3, 4
      %s42 = int_to_ptr.vmem [resolvable:$true] %s41
      %44 = dma.vmem_to_smem %s42, 16, [#allocation7], [#allocation6]
    $region17: #{tpu_custom_call.1} parent=1 // pred_fallthru
      _
    // Predicated region
    $region18: #{tpu_custom_call.1} parent=1 // pred_check
      _
    $region19: #{tpu_custom_call.1} parent=1 // pred_check_branch
      %46 = sbr.rel (0) target = $region21
    $region20: #{tpu_custom_call.1} parent=1 // pred_region
      _
    $region21: #{tpu_custom_call.1} parent=1 // pred_fallthru
      _
    // Predicated region
    $region22: #{tpu_custom_call.1} parent=1 // pred_check
      _
    $region23: #{tpu_custom_call.1} parent=1 // pred_check_branch
      %48 = sbr.rel (0) target = $region25
    $region24: #{tpu_custom_call.1} parent=1 // pred_region
      %49 = dma.done [#allocation4], 32
    $region25: #{tpu_custom_call.1} parent=1 // pred_fallthru
      _
    // Predicated region
    $region26: #{tpu_custom_call.1} parent=1 // pred_check
      _
    $region27: #{tpu_custom_call.1} parent=1 // pred_check_branch
      %51 = sbr.rel (0) target = $region29
    $region28: #{tpu_custom_call.1} parent=1 // pred_region
      %52 = dma.done [#allocation6], 16
    $region29: #{tpu_custom_call.1} parent=1 // pred_fallthru
      _
    // Predicated region
    $region30: #{tpu_custom_call.1} parent=1 // pred_check
      _
    $region31: #{tpu_custom_call.1} parent=1 // pred_check_branch
      %54 = sbr.rel (0) target = $region33
    $region32: #{tpu_custom_call.1} parent=1 // pred_region
      %55 = dma.done [#allocation6], 16
    $region33: #{tpu_custom_call.1} parent=1 // pred_fallthru
      _
    %56 = sfence
    %v57 = vld [vmem:[%s0] sm:$0xff]
    %s58 = sld [smem:[#allocation3]]
    %v59 = vstv %s58
    %v60 = vmul.f32 %v57, %v59
    %s61 = sld [smem:[#allocation3 + $0x1]]
    %v62 = vstv %s61
    %v63 = vmul.f32 %v57, %v62
    %65 = vrot.lane.b32.xlu0 %v63, 127
    %v66 = vpop.permute.xlu0 %65
    %v68 = vadd.f32 %v60, %v66
    %s69 = sld [smem:[#allocation5]]
    %v70 = vstv %s69
    %v71 = vadd.f32 %v68, %v70
    %s72 = sld [smem:[#allocation3 + $0x80]]
    %v73 = vstv %s72
    %v74 = vmul.f32 %v57, %v73
    %s75 = sld [smem:[#allocation3 + $0x81]]
    %v76 = vstv %s75
    %v77 = vmul.f32 %v57, %v76
    %79 = vrot.lane.b32.xlu0 %v77, 127
    %v80 = vpop.permute.xlu0 %79
    %v82 = vadd.f32 %v74, %v80
    %s83 = sld [smem:[#allocation5 + $0x1]]
    %v84 = vstv %s83
    %v85 = vadd.f32 %v82, %v84
    %v86 = vmax.f32 %v71, 0.0
    %v87 = vmax.f32 %v85, 0.0
    %s88 = sld [smem:[#allocation7]]
    %v89 = vstv %s88
    %v90 = vmul.f32 %v86, %v89
    %s91 = sld [smem:[#allocation7 + $0x1]]
    %v92 = vstv %s91
    %v93 = vmul.f32 %v87, %v92
    %v94 = vadd.f32 %v90, %v93
    %s95 = sld [smem:[#allocation2]]
    %v96 = vstv %s95
    %v97 = vadd.f32 %v94, %v96
    %vm98 = vcmask 7168
    %99 = vst.msk [vmem:[%s5] sm:$0xff] %vm98, %v97
    // Predicated region
    $region34: #{tpu_custom_call.1} parent=1 // pred_check
      _
    $region35: #{tpu_custom_call.1} parent=1 // pred_check_branch
      %101 = sbr.rel (0) target = $region37
    $region36: #{tpu_custom_call.1} parent=1 // pred_region
      _
    $region37: #{tpu_custom_call.1} parent=1 // pred_fallthru
      _
    // Predicated region
    $region38: #{tpu_custom_call.1} parent=1 // pred_check
      _
    $region39: #{tpu_custom_call.1} parent=1 // pred_check_branch
      %103 = sbr.rel (0) target = $region41
    $region40: #{tpu_custom_call.1} parent=1 // pred_region
      _
    $region41: #{tpu_custom_call.1} parent=1 // pred_fallthru
      _
    %104 = vsyncpa [#allocation4], 1
    %105 = vsyncpa [#allocation6], 1

</llo_original>
